<compile_context>
chip_gen: v7x
topology: tpu7x:2x2x1
jax: 0.10.0
libtpu: 0.0.40
codegen_flags: <defaults>
</compile_context>

<pallas_src>
import jax
import jax.numpy as jnp
from jax import lax
from jax.experimental import pallas as pl
from jax.experimental.pallas import tpu as pltpu


def _round_up(a: int, b: int) -> int:
    return ((a + b - 1) // b) * b


# --------------------------------------------------------------------------------------
# Kernels: num_classes == 1 (VPU multiply + lane reduce, bias in SMEM)
# --------------------------------------------------------------------------------------
def _c1_single_kernel(b_ref, x_ref, w_ref, o_ref):
    """Whole contraction axis resident: one shot, no scratch, no branches."""
    x = x_ref[...].astype(jnp.float32)            # (TN, D)
    w = w_ref[...].astype(jnp.float32)            # (1,  D)
    o_ref[...] = (jnp.sum(x * w, axis=-1, keepdims=True) + b_ref[0]).astype(o_ref.dtype)


def _c1_multi_kernel(b_ref, x_ref, w_ref, o_ref, acc_ref):
    """Tiled contraction axis: f32 accumulator, bias added on final K step."""
    k = pl.program_id(1)

    @pl.when(k == 0)
    def _():
        acc_ref[...] = jnp.zeros_like(acc_ref)

    x = x_ref[...].astype(jnp.float32)            # (TN, TK)
    w = w_ref[...].astype(jnp.float32)            # (1,  TK)
    acc_ref[...] += jnp.sum(x * w, axis=-1, keepdims=True)

    @pl.when(k == pl.num_programs(1) - 1)
    def _():
        o_ref[...] = (acc_ref[...] + b_ref[0]).astype(o_ref.dtype)


# --------------------------------------------------------------------------------------
# Kernels: general num_classes (MXU matmul contracting over D, weight kept (C, D))
# --------------------------------------------------------------------------------------
def _mxu_single_kernel(x_ref, w_ref, b_ref, o_ref):
    acc = lax.dot_general(
        x_ref[...], w_ref[...],
        dimension_numbers=(((1,), (1,)), ((), ())),   # contract x's D with weight's D
        preferred_element_type=jnp.float32,
    )
    o_ref[...] = (acc + b_ref[...].astype(jnp.float32)).astype(o_ref.dtype)


def _mxu_multi_kernel(x_ref, w_ref, b_ref, o_ref, acc_ref):
    k = pl.program_id(1)

    @pl.when(k == 0)
    def _():
        acc_ref[...] = jnp.zeros_like(acc_ref)

    acc_ref[...] += lax.dot_general(
        x_ref[...], w_ref[...],
        dimension_numbers=(((1,), (1,)), ((), ())),
        preferred_element_type=jnp.float32,
    )

    @pl.when(k == pl.num_programs(1) - 1)
    def _():
        o_ref[...] = (acc_ref[...] + b_ref[...].astype(jnp.float32)).astype(o_ref.dtype)


# --------------------------------------------------------------------------------------
# Wrapper
# --------------------------------------------------------------------------------------
def classifier_forward(x, weight, bias, *, tn: int = 512, tk: int = 2048):
    """Pallas equivalent of torch.nn.Linear forward.

    Args:
      x:      (N, D) float array.
      weight: (C, D) float array (torch.nn.Linear.weight layout).
      bias:   (C,)   float array.

    Returns:
      (N, C) array equal to x @ weight.T + bias.
    """
    N, D = x.shape
    C, D_w = weight.shape
    assert D == D_w, "weight feature dim must match x"
    out_dtype = x.dtype

    # Rows: tile to TN (multiple of 8 sublanes), pad N so the grid divides evenly.
    n_pad = _round_up(max(N, 8), 8)
    TN = min(tn, n_pad)
    n_pad = _round_up(n_pad, TN)

    # Contraction axis: keep D resident when small, else tile with TK (multiple of 128).
    if D <= tk:
        TK, d_pad = D, D
    else:
        TK, d_pad = tk, _round_up(D, tk)

    if n_pad != N or d_pad != D:
        x = jnp.pad(x, ((0, n_pad - N), (0, d_pad - D)))
    if d_pad != D:
        weight = jnp.pad(weight, ((0, 0), (0, d_pad - D)))

    ni = n_pad // TN
    nk = d_pad // TK
    single_k = nk == 1

    if C == 1:
        # Specialized path: no MXU, scalar bias in SMEM.
        bias_smem = bias.reshape(1).astype(jnp.float32)
        if single_k:
            out = pl.pallas_call(
                _c1_single_kernel,
                out_shape=jax.ShapeDtypeStruct((n_pad, 1), out_dtype),
                grid=(ni,),
                in_specs=[
                    pl.BlockSpec(memory_space=pltpu.MemorySpace.SMEM),   # bias scalar
                    pl.BlockSpec((TN, TK), lambda i: (i, 0)),            # x tile
                    pl.BlockSpec((1, TK), lambda i: (0, 0)),             # weight row
                ],
                out_specs=pl.BlockSpec((TN, 1), lambda i: (i, 0)),
                compiler_params=pltpu.CompilerParams(
                    dimension_semantics=("parallel",)),
            )(bias_smem, x, weight)
        else:
            out = pl.pallas_call(
                _c1_multi_kernel,
                out_shape=jax.ShapeDtypeStruct((n_pad, 1), out_dtype),
                grid=(ni, nk),
                in_specs=[
                    pl.BlockSpec(memory_space=pltpu.MemorySpace.SMEM),   # bias scalar
                    pl.BlockSpec((TN, TK), lambda i, k: (i, k)),         # x tile
                    pl.BlockSpec((1, TK), lambda i, k: (0, k)),          # weight row
                ],
                out_specs=pl.BlockSpec((TN, 1), lambda i, k: (i, 0)),
                scratch_shapes=[pltpu.VMEM((TN, 1), jnp.float32)],
                compiler_params=pltpu.CompilerParams(
                    dimension_semantics=("parallel", "arbitrary")),
            )(bias_smem, x, weight)
    else:
        b2 = bias.reshape(1, C)
        if single_k:
            out = pl.pallas_call(
                _mxu_single_kernel,
                out_shape=jax.ShapeDtypeStruct((n_pad, C), out_dtype),
                grid=(ni,),
                in_specs=[
                    pl.BlockSpec((TN, TK), lambda i: (i, 0)),   # x tile
                    pl.BlockSpec((C, TK), lambda i: (0, 0)),    # weight (C, D) as-is
                    pl.BlockSpec((1, C), lambda i: (0, 0)),     # bias row
                ],
                out_specs=pl.BlockSpec((TN, C), lambda i: (i, 0)),
                compiler_params=pltpu.CompilerParams(
                    dimension_semantics=("parallel",)),
            )(x, weight, b2)
        else:
            out = pl.pallas_call(
                _mxu_multi_kernel,
                out_shape=jax.ShapeDtypeStruct((n_pad, C), out_dtype),
                grid=(ni, nk),
                in_specs=[
                    pl.BlockSpec((TN, TK), lambda i, k: (i, k)),   # x tile
                    pl.BlockSpec((C, TK), lambda i, k: (0, k)),    # weight (C, D) as-is
                    pl.BlockSpec((1, C), lambda i, k: (0, 0)),     # bias row
                ],
                out_specs=pl.BlockSpec((TN, C), lambda i, k: (i, 0)),
                scratch_shapes=[pltpu.VMEM((TN, C), jnp.float32)],
                compiler_params=pltpu.CompilerParams(
                    dimension_semantics=("parallel", "arbitrary")),
            )(x, weight, b2)

    return out[:N]


class ClassifierPallas:
    """Linear classifier (forward pass only), weights held as JAX arrays."""

    def __init__(self, input_dim: int, num_classes: int = 1, dtype=jnp.float32):
        # Matches the PyTorch __init__: weight and bias are zeroed.
        self.weight = jnp.zeros((num_classes, input_dim), dtype=dtype)
        self.bias = jnp.zeros((num_classes,), dtype=dtype)

    def __call__(self, x):
        return classifier_forward(x, self.weight, self.bias)

    # TODO(synk): fit / fit_cv (host-driven L-BFGS with strong-Wolfe line search) and
    # nullspace_project (torch.linalg.solve) are iterative / solver ops with no clean
    # single-kernel Pallas equivalent; only the forward pass is implemented here.


if __name__ == "__main__":
    key = jax.random.PRNGKey(0)
    k1, k2, k3, k4, k5, k6, k7, k8, k9, k10 = jax.random.split(key, 10)

    # --- Case 1: module defaults (num_classes=1, zero-initialized params) -> zero logits.
    N, D, C = 8, 32, 1
    x = jax.random.normal(k1, (N, D), dtype=jnp.float32)
    clf = ClassifierPallas(input_dim=D, num_classes=C)
    out_zero = jax.block_until_ready(clf(x))
    assert out_zero.shape == (N, C)
    assert jnp.allclose(out_zero, 0.0)

    # --- Case 2: C == 1 specialized path (single K step) with non-trivial params.
    w = jax.random.normal(k2, (C, D), dtype=jnp.float32) * 0.1
    b = jax.random.normal(k3, (C,), dtype=jnp.float32) * 0.1
    out = jax.block_until_ready(classifier_forward(x, w, b))
    ref = x @ w.T + b
    assert out.shape == (N, C)
    assert jnp.allclose(out, ref, atol=1e-5, rtol=1e-5), "C=1 single-K path mismatch"

    # --- Case 3: general MXU path (C>1, single K step) with non-multiple-of-8 N.
    N2, C2 = 10, 4
    x2 = jax.random.normal(k4, (N2, D), dtype=jnp.float32)
    w2 = jax.random.normal(k5, (C2, D), dtype=jnp.float32) * 0.1
    b2 = jax.random.normal(k6, (C2,), dtype=jnp.float32) * 0.1
    out2 = jax.block_until_ready(classifier_forward(x2, w2, b2))
    ref2 = x2 @ w2.T + b2
    assert out2.shape == (N2, C2)
    assert jnp.allclose(out2, ref2, atol=1e-5, rtol=1e-5), "MXU single-K path mismatch"

    # --- Case 4: C == 1 path with tiled contraction axis (multi-K accumulator).
    N3, D3 = 16, 256
    x3 = jax.random.normal(k7, (N3, D3), dtype=jnp.float32)
    w3 = jax.random.normal(k8, (1, D3), dtype=jnp.float32) * 0.05
    b3 = jax.random.normal(k9, (1,), dtype=jnp.float32) * 0.1
    out3 = jax.block_until_ready(classifier_forward(x3, w3, b3, tk=128))
    ref3 = x3 @ w3.T + b3
    assert jnp.allclose(out3, ref3, atol=1e-5, rtol=1e-5), "C=1 multi-K path mismatch"

    # --- Case 5: general MXU path with tiled contraction axis (multi-K accumulator).
    C4 = 3
    w4 = jax.random.normal(k10, (C4, D3), dtype=jnp.float32) * 0.05
    b4 = jnp.arange(C4, dtype=jnp.float32) * 0.01
    out4 = jax.block_until_ready(classifier_forward(x3, w4, b4, tk=128))
    ref4 = x3 @ w4.T + b4
    assert jnp.allclose(out4, ref4, atol=1e-5, rtol=1e-5), "MXU multi-K path mismatch"

    print("KERNEL_OK")
</pallas_src>

<mosaic_0001>
module attributes {stable_mosaic.version = 11 : i64} {
  func.func @_c1_single_kernel(%arg0: i32, %arg1: memref<1xf32, #tpu.memory_space<smem>>, %arg2: memref<8x32xf32, #tpu.memory_space<vmem>>, %arg3: memref<1x32xf32, #tpu.memory_space<vmem>>, %arg4: memref<8x1xf32, #tpu.memory_space<vmem>>) attributes {dimension_semantics = [#tpu.dimension_semantics<parallel>], iteration_bounds = array<i64: 1>, scalar_prefetch = 0 : i64, scratch_operands = 0 : i64, tpu.core_type = #tpu.core_type<tc>, window_params = [{transform_indices = @transform_0, window_bounds = array<i64: 1>}, {transform_indices = @transform_1, window_bounds = array<i64: 8, 32>}, {pipeline_mode = #tpu.pipeline_mode<synchronous>, transform_indices = @transform_2, window_bounds = array<i64: 1, 32>}, {transform_indices = @transform_3, window_bounds = array<i64: 8, 1>}]} {
    %c0 = arith.constant 0 : index
    %c0_0 = arith.constant 0 : index
    %0 = vector.load %arg2[%c0, %c0_0] : memref<8x32xf32, #tpu.memory_space<vmem>>, vector<8x32xf32>
    %c0_1 = arith.constant 0 : index
    %c0_2 = arith.constant 0 : index
    %1 = vector.load %arg3[%c0_1, %c0_2] : memref<1x32xf32, #tpu.memory_space<vmem>>, vector<1x32xf32>
    %2 = vector.broadcast %1 : vector<1x32xf32> to vector<8x32xf32>
    %3 = arith.mulf %0, %2 : vector<8x32xf32>
    %cst = arith.constant dense<0.000000e+00> : vector<8xf32>
    %4 = vector.multi_reduction <add>, %3, %cst [1] : vector<8x32xf32> to vector<8xf32>
    %5 = vector.shape_cast %4 : vector<8xf32> to vector<8x1xf32>
    %c0_3 = arith.constant 0 : index
    %6 = memref.load %arg1[%c0_3] : memref<1xf32, #tpu.memory_space<smem>>
    %7 = vector.broadcast %6 : f32 to vector<8x1xf32>
    %8 = arith.addf %5, %7 : vector<8x1xf32>
    %c0_4 = arith.constant 0 : index
    %c0_5 = arith.constant 0 : index
    %9 = vector.load %arg4[%c0_4, %c0_5] : memref<8x1xf32, #tpu.memory_space<vmem>>, vector<8x1xf32>
    tpu.vector_store %arg4[%c0_4, %c0_5], %8 {strides = array<i32>} : memref<8x1xf32, #tpu.memory_space<vmem>>, vector<8x1xf32>,
    return
  }
  func.func @transform_0(%arg0: i32) -> i32 {
    %c0_i32 = arith.constant 0 : i32
    %c0_i32_0 = arith.constant 0 : i32
    return %c0_i32 : i32
  }
  func.func @transform_1(%arg0: i32) -> (i32, i32) {
    %c0_i32 = arith.constant 0 : i32
    %c0_i32_0 = arith.constant 0 : i32
    return %arg0, %c0_i32 : i32, i32
  }
  func.func @transform_2(%arg0: i32) -> (i32, i32) {
    %c0_i32 = arith.constant 0 : i32
    %c0_i32_0 = arith.constant 0 : i32
    %c0_i32_1 = arith.constant 0 : i32
    return %c0_i32, %c0_i32_0 : i32, i32
  }
  func.func @transform_3(%arg0: i32) -> (i32, i32) {
    %c0_i32 = arith.constant 0 : i32
    %c0_i32_0 = arith.constant 0 : i32
    return %arg0, %c0_i32 : i32, i32
  }
}

</mosaic_0001>

<llo_original>
// kernel: tpu_custom_call.1
$region0: #{tpu_custom_call.1}
  #allocation0 [shape = 'u32[]', space=smem, size = 0x4, offset = 0x4, fixed_abs, tag = 'smem constant byte address 0x4 - core index']
  #allocation1 [shape = 'u32[144,128]{1,0:T(1,128)}', space=vmem, size = 0x12000, scoped, tag = 'internal scratch']
  #allocation2 [shape = 'f32[1]{0:T(128)S(6)}', space=smem, size = 0x200, scoped, tag = 'scoped memory for tpu_custom_call.1']
  %s0 = inlined_call_operand.<no memory space> [shape: f32[1], index: 0, kind: input, shape index: {}]
  %s1 = inlined_call_operand.hbm [shape: f32[8,32], index: 1, kind: input, shape index: {}]
  %s2 = inlined_call_operand.vmem [shape: f32[1,32], index: 2, kind: input, shape index: {}]
  %s3 = inlined_call_operand.vmem [shape: f32[8,1], index: 3, kind: output, shape index: {}]
  %s4 = sld [smem:[#allocation0]]
  $region26: #{tpu_custom_call.1} parent=0
    _
  %s6 = ssub.s32 1, %s4
  %s7 = scalar_select 0, %s6, %s4
  %8 = sst [smem:[#allocation2]] %s0
  $region1: #{tpu_custom_call.1} parent=0
    #allocation3 [shape = 'u8[4096]{0}', space=vmem, size = 0x1000, scoped, tag = 'input window, operand 1, single buffered']
    #allocation4 [shape = 's32[1]{0}', space=sflag, size = 0x4, scoped, tag = 'scoped memory for tpu_custom_call.1']
    %9 = vsyncpa [#allocation4], 0
    // Predicated region
    $region2: #{tpu_custom_call.1} parent=1 // pred_check
      _
    $region3: #{tpu_custom_call.1} parent=1 // pred_check_branch
      %11 = sbr.rel (0) target = $region5
    $region4: #{tpu_custom_call.1} parent=1 // pred_region
      _
    $region5: #{tpu_custom_call.1} parent=1 // pred_fallthru
      _
    // Predicated region
    $region6: #{tpu_custom_call.1} parent=1 // pred_check
      _
    $region7: #{tpu_custom_call.1} parent=1 // pred_check_branch
      %13 = sbr.rel (0) target = $region9
    $region8: #{tpu_custom_call.1} parent=1 // pred_region
      %s15 = ssub.s32 128, 128
      %16 = vsyncadd [#allocation4], %s15
      %s18 = sshll.u32 [#allocation3], 4
      %s19 = int_to_ptr.vmem [resolvable:$true] %s18
      %21 = dma.hbm_to_vmem [thread:$0]  %s1, 128, %s19, [#allocation4]
    $region9: #{tpu_custom_call.1} parent=1 // pred_fallthru
      _
    // Predicated region
    $region10: #{tpu_custom_call.1} parent=1 // pred_check
      _
    $region11: #{tpu_custom_call.1} parent=1 // pred_check_branch
      %23 = sbr.rel (0) target = $region13
    $region12: #{tpu_custom_call.1} parent=1 // pred_region
      _
    $region13: #{tpu_custom_call.1} parent=1 // pred_fallthru
      _
    // Predicated region
    $region14: #{tpu_custom_call.1} parent=1 // pred_check
      _
    $region15: #{tpu_custom_call.1} parent=1 // pred_check_branch
      %25 = sbr.rel (0) target = $region17
    $region16: #{tpu_custom_call.1} parent=1 // pred_region
      %26 = dma.done [#allocation4], 128
    $region17: #{tpu_custom_call.1} parent=1 // pred_fallthru
      _
    %v27 = vld [vmem:[#allocation3] sm:$0xff]
    %v28 = vld [vmem:[%s2] sm:$0x1]
    %v30 = vlaneseq
    %v31 = vshrl.u32 %v30, 7
    %v32 = vsub.s32 0, %v31
    %v33 = vrot.slane %v28, %v32
    %v35 = vmul.f32 %v27, %v33
    %vm36 = vcmask 261120
    %v37 = vsel %vm36, %v35, 0.0
    %38 = vadd.xlane.f32.xlu0 %v37
    %v39 = vpop.xlane.xlu0 %38
    %s40 = sld [smem:[#allocation2]]
    %v41 = vstv %s40
    %v42 = vadd.f32 %v39, %v41
    %vm43 = vcmask 7168
    %44 = vst.msk [vmem:[%s3] sm:$0xff] %vm43, %v42
    // Predicated region
    $region18: #{tpu_custom_call.1} parent=1 // pred_check
      _
    $region19: #{tpu_custom_call.1} parent=1 // pred_check_branch
      %46 = sbr.rel (0) target = $region21
    $region20: #{tpu_custom_call.1} parent=1 // pred_region
      _
    $region21: #{tpu_custom_call.1} parent=1 // pred_fallthru
      _
    // Predicated region
    $region22: #{tpu_custom_call.1} parent=1 // pred_check
      _
    $region23: #{tpu_custom_call.1} parent=1 // pred_check_branch
      %48 = sbr.rel (0) target = $region25
    $region24: #{tpu_custom_call.1} parent=1 // pred_region
      _
    $region25: #{tpu_custom_call.1} parent=1 // pred_fallthru
      _
    %49 = vsyncpa [#allocation4], 1

</llo_original>
